<compile_context>
chip_gen: v7x
topology: tpu7x:2x2x1
jax: 0.10.0
libtpu: 0.0.40
codegen_flags: <defaults>
</compile_context>

<pallas_src>
import functools

import jax
import jax.numpy as jnp
from jax.experimental import pallas as pl
from jax.experimental.pallas import tpu as pltpu


def _simam_kernel(x_ref, o_ref, *, n: float, e_lambda: float):
    # x_ref / o_ref: (TR, L) row-tile in VMEM; each row is one (batch, channel)
    # pair, L (reduction axis) is kept whole.
    x = x_ref[...].astype(jnp.float32)

    mu = jnp.mean(x, axis=-1, keepdims=True)          # (TR, 1)
    d = x - mu
    d2 = d * d                                        # reused for the output pass
    s = jnp.sum(d2, axis=-1, keepdims=True)           # (TR, 1)

    # n == 0 (L == 1) gives inf/nan, matching the PyTorch reference.
    denom = 4.0 * (s / n + e_lambda)                  # (TR, 1)
    inv_denom = pl.reciprocal(denom)                  # per-row, exact (column is tiny)

    y = d2 * inv_denom + 0.5                          # broadcast multiply, no full-tile divide
    o_ref[...] = (x * jax.nn.sigmoid(y)).astype(o_ref.dtype)


def _sublane_multiple(dtype) -> int:
    # 8 for 4-byte, 16 for 2-byte, 32 for 1-byte dtypes (packed sublanes).
    itemsize = jnp.dtype(dtype).itemsize
    return max(8, 32 // itemsize)


def simam(x: jax.Array, e_lambda: float = 1e-4, *,
          target_block_bytes: int = 2 << 20) -> jax.Array:
    """SimAM attention, x: (B, C, L) -> (B, C, L)."""
    B, C, L = x.shape
    n = L - 1
    R = B * C
    x2 = x.reshape(R, L)

    itemsize = jnp.dtype(x.dtype).itemsize
    sub = _sublane_multiple(x.dtype)

    # Rows per block: aim for ~target_block_bytes, rounded to the sublane
    # multiple, never more than (padded) R.
    tr = max(sub, (target_block_bytes // max(1, L * itemsize)) // sub * sub)
    tr = min(tr, pl.cdiv(R, sub) * sub)

    r_pad = pl.cdiv(R, tr) * tr
    if r_pad != R:
        x2 = jnp.pad(x2, ((0, r_pad - R), (0, 0)))

    kernel = functools.partial(_simam_kernel, n=float(n), e_lambda=float(e_lambda))
    out = pl.pallas_call(
        kernel,
        out_shape=jax.ShapeDtypeStruct((r_pad, L), x.dtype),
        grid_spec=pltpu.PrefetchScalarGridSpec(
            num_scalar_prefetch=0,
            grid=(r_pad // tr,),
            in_specs=[pl.BlockSpec((tr, L), lambda r: (r, 0))],
            out_specs=pl.BlockSpec((tr, L), lambda r: (r, 0)),
        ),
        compiler_params=pltpu.CompilerParams(
            dimension_semantics=("parallel",),
            vmem_limit_bytes=32 << 20,  # fits v5e/v6e/v7x scoped VMEM budgets
        ),
    )(x2)

    if r_pad != R:
        out = out[:R]
    return out.reshape(B, C, L)


def _simam_ref(x: jax.Array, e_lambda: float = 1e-4) -> jax.Array:
    """Pure-JAX reference mirroring the PyTorch forward."""
    xf = x.astype(jnp.float32)
    l = x.shape[-1]
    nn_ = l - 1
    d2 = (xf - jnp.mean(xf, axis=-1, keepdims=True)) ** 2
    y = d2 / (4.0 * (jnp.sum(d2, axis=-1, keepdims=True) / nn_ + e_lambda)) + 0.5
    return (xf * jax.nn.sigmoid(y)).astype(x.dtype)


if __name__ == "__main__":
    key = jax.random.PRNGKey(0)
    B, C, L = 2, 4, 16  # small (b, c, l) consistent with the module's forward
    x = jax.random.normal(key, (B, C, L), dtype=jnp.float32)

    out = simam(x)
    out = jax.block_until_ready(out)

    ref = _simam_ref(x)
    assert out.shape == (B, C, L)
    assert jnp.allclose(out, ref, atol=1e-5, rtol=1e-5), "mismatch vs reference"

    print("KERNEL_OK")
</pallas_src>

<mosaic_0001>
module attributes {stable_mosaic.version = 11 : i64} {
  func.func @_simam_kernel(%arg0: i32, %arg1: memref<8x16xf32, #tpu.memory_space<vmem>>, %arg2: memref<8x16xf32, #tpu.memory_space<vmem>>) attributes {dimension_semantics = [#tpu.dimension_semantics<parallel>], iteration_bounds = array<i64: 1>, scalar_prefetch = 0 : i64, scratch_operands = 0 : i64, tpu.core_type = #tpu.core_type<tc>, window_params = [{transform_indices = @transform_0, window_bounds = array<i64: 8, 16>}, {transform_indices = @transform_1, window_bounds = array<i64: 8, 16>}]} {
    %c0 = arith.constant 0 : index
    %c0_0 = arith.constant 0 : index
    %0 = vector.load %arg1[%c0, %c0_0] : memref<8x16xf32, #tpu.memory_space<vmem>>, vector<8x16xf32>
    %cst = arith.constant dense<0.000000e+00> : vector<8xf32>
    %1 = vector.multi_reduction <add>, %0, %cst [1] : vector<8x16xf32> to vector<8xf32>
    %2 = vector.shape_cast %1 : vector<8xf32> to vector<8x1xf32>
    %cst_1 = arith.constant 1.600000e+01 : f32
    %3 = vector.broadcast %cst_1 : f32 to vector<8x1xf32>
    %4 = arith.divf %2, %3 : vector<8x1xf32>
    %5 = vector.broadcast %4 : vector<8x1xf32> to vector<8x16xf32>
    %6 = arith.subf %0, %5 : vector<8x16xf32>
    %7 = arith.mulf %6, %6 : vector<8x16xf32>
    %cst_2 = arith.constant dense<0.000000e+00> : vector<8xf32>
    %8 = vector.multi_reduction <add>, %7, %cst_2 [1] : vector<8x16xf32> to vector<8xf32>
    %9 = vector.shape_cast %8 : vector<8xf32> to vector<8x1xf32>
    %cst_3 = arith.constant 1.500000e+01 : f32
    %10 = vector.broadcast %cst_3 : f32 to vector<8x1xf32>
    %11 = arith.divf %9, %10 : vector<8x1xf32>
    %cst_4 = arith.constant 9.99999974E-5 : f32
    %12 = vector.broadcast %cst_4 : f32 to vector<8x1xf32>
    %13 = arith.addf %11, %12 : vector<8x1xf32>
    %cst_5 = arith.constant 4.000000e+00 : f32
    %14 = vector.broadcast %cst_5 : f32 to vector<8x1xf32>
    %15 = arith.mulf %14, %13 : vector<8x1xf32>
    %16 = tpu.reciprocal %15 : vector<8x1xf32> -> vector<8x1xf32>
    %17 = vector.broadcast %16 : vector<8x1xf32> to vector<8x16xf32>
    %18 = arith.mulf %7, %17 : vector<8x16xf32>
    %cst_6 = arith.constant 5.000000e-01 : f32
    %19 = vector.broadcast %cst_6 : f32 to vector<8x16xf32>
    %20 = arith.addf %18, %19 : vector<8x16xf32>
    %21 = arith.negf %20 : vector<8x16xf32>
    %22 = math.exp %21 : vector<8x16xf32>
    %cst_7 = arith.constant 1.000000e+00 : f32
    %23 = vector.broadcast %cst_7 : f32 to vector<8x16xf32>
    %24 = arith.addf %23, %22 : vector<8x16xf32>
    %25 = arith.divf %23, %24 : vector<8x16xf32>
    %26 = arith.mulf %0, %25 : vector<8x16xf32>
    %c0_8 = arith.constant 0 : index
    %c0_9 = arith.constant 0 : index
    %27 = vector.load %arg2[%c0_8, %c0_9] : memref<8x16xf32, #tpu.memory_space<vmem>>, vector<8x16xf32>
    tpu.vector_store %arg2[%c0_8, %c0_9], %26 {strides = array<i32>} : memref<8x16xf32, #tpu.memory_space<vmem>>, vector<8x16xf32>,
    return
  }
  func.func @transform_0(%arg0: i32) -> (i32, i32) {
    %c0_i32 = arith.constant 0 : i32
    %c0_i32_0 = arith.constant 0 : i32
    return %arg0, %c0_i32 : i32, i32
  }
  func.func @transform_1(%arg0: i32) -> (i32, i32) {
    %c0_i32 = arith.constant 0 : i32
    %c0_i32_0 = arith.constant 0 : i32
    return %arg0, %c0_i32 : i32, i32
  }
}

</mosaic_0001>

<llo_original>
// kernel: tpu_custom_call.1
$region0: #{tpu_custom_call.1}
  #allocation0 [shape = 'u32[]', space=smem, size = 0x4, offset = 0x4, fixed_abs, tag = 'smem constant byte address 0x4 - core index']
  #allocation1 [shape = 'u32[144,128]{1,0:T(1,128)}', space=vmem, size = 0x12000, scoped, tag = 'internal scratch']
  %s0 = inlined_call_operand.hbm [shape: f32[8,16], index: 0, kind: input, shape index: {}]
  %s1 = inlined_call_operand.hbm [shape: f32[8,16], index: 1, kind: output, shape index: {}]
  %s2 = sld [smem:[#allocation0]]
  $region18: #{tpu_custom_call.1} parent=0
    _
  %s4 = ssub.s32 1, %s2
  %s5 = scalar_select 0, %s4, %s2
  $region1: #{tpu_custom_call.1} parent=0
    #allocation2 [shape = 'u8[4096]{0}', space=vmem, size = 0x1000, scoped, tag = 'input window, operand 0, single buffered']
    #allocation3 [shape = 's32[1]{0}', space=sflag, size = 0x4, scoped, tag = 'scoped memory for tpu_custom_call.1']
    #allocation4 [shape = 's32[1]{0}', space=sflag, size = 0x4, scoped, tag = 'scoped memory for tpu_custom_call.1']
    #allocation5 [shape = 'u8[4096]{0}', space=vmem, size = 0x1000, scoped, tag = 'output window, operand 0, single buffered']
    %6 = vsyncpa [#allocation3], 0
    %7 = vsyncpa [#allocation4], 0
    // Predicated region
    $region2: #{tpu_custom_call.1} parent=1 // pred_check
      _
    $region3: #{tpu_custom_call.1} parent=1 // pred_check_branch
      %9 = sbr.rel (0) target = $region5
    $region4: #{tpu_custom_call.1} parent=1 // pred_region
      %s11 = ssub.s32 128, 128
      %12 = vsyncadd [#allocation3], %s11
      %s14 = sshll.u32 [#allocation2], 4
      %s15 = int_to_ptr.vmem [resolvable:$true] %s14
      %17 = dma.hbm_to_vmem [thread:$0]  %s0, 128, %s15, [#allocation3]
    $region5: #{tpu_custom_call.1} parent=1 // pred_fallthru
      _
    // Predicated region
    $region6: #{tpu_custom_call.1} parent=1 // pred_check
      _
    $region7: #{tpu_custom_call.1} parent=1 // pred_check_branch
      %19 = sbr.rel (0) target = $region9
    $region8: #{tpu_custom_call.1} parent=1 // pred_region
      %20 = dma.done [#allocation3], 128
    $region9: #{tpu_custom_call.1} parent=1 // pred_fallthru
      _
    %v21 = vld [vmem:[#allocation2] sm:$0xff]
    %vm22 = vcmask 130048
    %v23 = vsel %vm22, %v21, 0.0
    %24 = vadd.xlane.f32.xlu0 %v23
    %v25 = vpop.xlane.xlu0 %24
    %v26 = vrcp.pop 16.0
    %v27 = vmul.f32 %v25, %v26
    %v28 = vsub.f32 %v21, %v27
    %v29 = vmul.f32 %v28, %v28
    %v30 = vsel %vm22, %v29, 0.0
    %31 = vadd.xlane.f32.xlu0 %v30
    %v32 = vpop.xlane.xlu0 %31
    %v33 = vrcp.pop 15.0
    %v34 = vmul.f32 %v32, %v33
    %v35 = vadd.f32 %v34, 0.0001
    %v36 = vmul.f32 %v35, 4.0
    %v37 = vrcp.pop %v36
    %v38 = vmul.f32 %v29, %v37
    %v39 = vadd.f32 %v38, 0.5
    %v40 = vxor.u32 %v39, 2147483648
    %v41 = vmul.f32 %v40, 1.442695
    %v42 = vpow.pop %v41
    %v43 = vadd.f32 %v42, 1.0
    %v44 = vrcp.pop %v43
    %v45 = vmul.f32 1.0, %v44
    %v46 = vmul.f32 %v21, %v45
    %47 = vst.msk [vmem:[#allocation5] sm:$0xff] %vm22, %v46
    // Predicated region
    $region10: #{tpu_custom_call.1} parent=1 // pred_check
      _
    $region11: #{tpu_custom_call.1} parent=1 // pred_check_branch
      %49 = sbr.rel (0) target = $region13
    $region12: #{tpu_custom_call.1} parent=1 // pred_region
      %s51 = ssub.s32 128, 128
      %52 = vsyncadd [#allocation4], %s51
      %s54 = sshll.u32 [#allocation5], 4
      %s55 = int_to_ptr.vmem [resolvable:$true] %s54
      %57 = dma.vmem_to_hbm [thread:$0]  %s55, 128, %s1, [#allocation4]
    $region13: #{tpu_custom_call.1} parent=1 // pred_fallthru
      _
    // Predicated region
    $region14: #{tpu_custom_call.1} parent=1 // pred_check
      _
    $region15: #{tpu_custom_call.1} parent=1 // pred_check_branch
      %59 = sbr.rel (0) target = $region17
    $region16: #{tpu_custom_call.1} parent=1 // pred_region
      %60 = dma.done [#allocation4], 128
    $region17: #{tpu_custom_call.1} parent=1 // pred_fallthru
      _
    %61 = vsyncpa [#allocation3], 1
    %62 = vsyncpa [#allocation4], 1

</llo_original>
